<compile_context>
chip_gen: v5e
topology: v5e:2x2
jax: 0.10.0
libtpu: 0.0.40
codegen_flags: <defaults>
</compile_context>

<pallas_src>
import functools

import numpy as np

import jax
import jax.numpy as jnp
from jax import lax
from jax.experimental import pallas as pl
from jax.experimental.pallas import tpu as pltpu


_LANE = 128
_SUBLANE = 8
_ABT_DIMNUMS = (((1,), (1,)), ((), ()))     # contract last dims: A @ B^T


def _round_up(n, m):
    return ((n + m - 1) // m) * m


def _vmem_limit_bytes():
    """Generation-aware scoped-VMEM limit (~75% of physical, capped at 100 MiB).
    v5e/v6e (128 MiB) -> 96 MiB; v7x (64 MiB) -> 48 MiB; unknown -> 48 MiB."""
    cap = 64 * 1024 * 1024
    try:
        info = pltpu.get_tpu_info()
        cap = int(getattr(info, "vmem_capacity_bytes", cap))
    except Exception:
        pass
    return min(int(0.75 * cap), 100 * 1024 * 1024)


def _pad2d(a, rows, cols):
    r, c = a.shape
    if r == rows and c == cols:
        return a
    return jnp.pad(a, ((0, rows - r), (0, cols - c)))


# --------------------------------------------------------------------------- #
# Fused fast path: normalize + all three cosine products in one kernel.
# fp32 math throughout (small shapes -> MXU throughput irrelevant, better
# numerical parity with the fp32 PyTorch reference).
# --------------------------------------------------------------------------- #
def _fused_cosine_kernel(x_ref, wt_ref, costh_ref, costhw_ref, costhx_ref):
    x = x_ref[...]                                   # [Bp, Dp] f32
    wt = wt_ref[...]                                 # [Cp, Dp] f32 (W columns as rows)
    # norm(...).clamp(min=1e-12) then divide  ==  * rsqrt(max(sum_sq, 1e-24))
    xn = x * lax.rsqrt(jnp.maximum(jnp.sum(x * x, axis=1, keepdims=True), 1e-24))
    wn = wt * lax.rsqrt(jnp.maximum(jnp.sum(wt * wt, axis=1, keepdims=True), 1e-24))
    costh_ref[...] = lax.dot_general(xn, wn, _ABT_DIMNUMS,
                                     preferred_element_type=jnp.float32)
    costhw_ref[...] = lax.dot_general(wn, wn, _ABT_DIMNUMS,
                                      preferred_element_type=jnp.float32)
    costhx_ref[...] = lax.dot_general(xn, xn, _ABT_DIMNUMS,
                                      preferred_element_type=jnp.float32)


def _fused_cosines(x, W, vmem_limit):
    B, D = x.shape
    C = W.shape[1]
    Bp = _round_up(B, _SUBLANE)                      # sublane-only padding
    Cp = _round_up(C, _SUBLANE)
    Dp = _round_up(D, _LANE)                         # lane dim -> 128 multiple
    xp = _pad2d(x.astype(jnp.float32), Bp, Dp)
    wtp = _pad2d(W.astype(jnp.float32).T, Cp, Dp)
    costh, costh_w, costh_x = pl.pallas_call(
        _fused_cosine_kernel,
        out_shape=(jax.ShapeDtypeStruct((Bp, Cp), jnp.float32),
                   jax.ShapeDtypeStruct((Cp, Cp), jnp.float32),
                   jax.ShapeDtypeStruct((Bp, Bp), jnp.float32)),
        compiler_params=pltpu.CompilerParams(vmem_limit_bytes=vmem_limit),
    )(xp, wtp)
    return costh[:B, :C], costh_w[:C, :C], costh_x[:B, :B]


# --------------------------------------------------------------------------- #
# Tiled path, kernel 1: row-wise L2 normalization (fp32 math, bf16 output).
# --------------------------------------------------------------------------- #
def _l2_normalize_rows_kernel(x_ref, o_ref):
    x = x_ref[...]
    ssq = jnp.maximum(jnp.sum(x * x, axis=1, keepdims=True), 1e-24)
    o_ref[...] = (x * lax.rsqrt(ssq)).astype(o_ref.dtype)


def _l2_normalize_rows(x, out_dtype, vmem_limit):
    """x: [R, D] fp32, R and D multiples of 128. Returns row-normalized [R, D]."""
    R, D = x.shape
    out_isz = jnp.dtype(out_dtype).itemsize
    budget = int(0.4 * vmem_limit)
    tb = 128
    for cand in (2048, 1024, 512, 256, 128):         # multi-MiB tiles: HBM-bound pass
        if R % cand == 0 and 2 * cand * D * (4 + out_isz) <= budget:
            tb = cand
            break
    # TODO(synk): for extremely large D, add a reduction grid axis instead of
    #             keeping the full row resident per tile.
    return pl.pallas_call(
        _l2_normalize_rows_kernel,
        grid=(R // tb,),
        in_specs=[pl.BlockSpec((tb, D), lambda i: (i, 0))],
        out_specs=pl.BlockSpec((tb, D), lambda i: (i, 0)),
        out_shape=jax.ShapeDtypeStruct((R, D), out_dtype),
        compiler_params=pltpu.CompilerParams(
            dimension_semantics=("parallel",),
            vmem_limit_bytes=vmem_limit),
    )(x)


# --------------------------------------------------------------------------- #
# Tiled path, kernel 2: A @ B^T (contract last dims), bf16 in / fp32 out,
# fp32 VMEM accumulator, K-innermost grid.
# --------------------------------------------------------------------------- #
def _abt_matmul_kernel(a_ref, b_ref, o_ref, acc_ref):
    @pl.when(pl.program_id(2) == 0)
    def _():
        acc_ref[...] = jnp.zeros_like(acc_ref)

    acc_ref[...] += lax.dot_general(a_ref[...], b_ref[...], _ABT_DIMNUMS,
                                    preferred_element_type=jnp.float32)

    @pl.when(pl.program_id(2) == pl.num_programs(2) - 1)
    def _():
        o_ref[...] = acc_ref[...].astype(o_ref.dtype)


def _select_mm_tiles(M, N, K, vmem_limit, in_itemsize=2):
    """Largest tiles fitting ~70% of the scoped VMEM budget; maximize arithmetic
    intensity tm*tn/(tm+tn) first, then tk."""
    budget = int(0.7 * vmem_limit)
    best = None
    for tm in (1024, 512, 256, 128):
        if M % tm:
            continue
        for tn in (1024, 512, 256, 128):
            if N % tn:
                continue
            for tk in (2048, 1024, 512, 256, 128):
                if K % tk:
                    continue
                need = (2 * tm * tk * in_itemsize + 2 * tn * tk * in_itemsize
                        + 2 * tm * tn * 4 + tm * tn * 4)
                if need > budget:
                    continue
                score = ((tm * tn) / (tm + tn), tk)
                if best is None or score > best[0]:
                    best = (score, (tm, tn, tk))
    assert best is not None, "128x128x128 tiles should always fit"
    return best[1]


def _matmul_abt(a, b, vmem_limit):
    """a: [M, K], b: [N, K] bf16 (all dims multiples of 128). fp32 a @ b^T."""
    M, K = a.shape
    N, K2 = b.shape
    assert K == K2
    tm, tn, tk = _select_mm_tiles(M, N, K, vmem_limit)
    return pl.pallas_call(
        _abt_matmul_kernel,
        grid=(M // tm, N // tn, K // tk),
        in_specs=[pl.BlockSpec((tm, tk), lambda i, j, k: (i, k)),
                  pl.BlockSpec((tn, tk), lambda i, j, k: (j, k))],
        out_specs=pl.BlockSpec((tm, tn), lambda i, j, k: (i, j)),
        out_shape=jax.ShapeDtypeStruct((M, N), jnp.float32),
        scratch_shapes=[pltpu.VMEM((tm, tn), jnp.float32)],
        compiler_params=pltpu.CompilerParams(
            dimension_semantics=("parallel", "parallel", "arbitrary"),
            vmem_limit_bytes=vmem_limit),
    )(a, b)


# --------------------------------------------------------------------------- #
# Tiled path, kernel 3: symmetric Gram a @ a^T, upper-triangular blocks only.
# 1-D grid over the T*(T+1)/2 (i<=j) block pairs, block tables scalar-prefetched
# into SMEM; lower-triangular blocks are never computed or written.
# --------------------------------------------------------------------------- #
def _gram_abt_kernel(ii_ref, jj_ref, a_ref, b_ref, o_ref, acc_ref):
    del ii_ref, jj_ref   # consumed by the index_maps only

    @pl.when(pl.program_id(1) == 0)
    def _():
        acc_ref[...] = jnp.zeros_like(acc_ref)

    acc_ref[...] += lax.dot_general(a_ref[...], b_ref[...], _ABT_DIMNUMS,
                                    preferred_element_type=jnp.float32)

    @pl.when(pl.program_id(1) == pl.num_programs(1) - 1)
    def _():
        o_ref[...] = acc_ref[...].astype(o_ref.dtype)


def _gram_upper_abt(a, vmem_limit):
    """a: [R, K] bf16 (multiples of 128). Returns fp32 [R, R] whose upper-
    triangular blocks hold a @ a^T; lower-triangular blocks are undefined."""
    R, K = a.shape
    budget = int(0.7 * vmem_limit)
    t, tk = 128, 128
    found = False
    for tc in (512, 256, 128):            # cap square tile at 512: bounds the
        if R % tc:                        # wasted lower-half work in diag blocks
            continue
        for tkc in (2048, 1024, 512, 256, 128):
            if K % tkc:
                continue
            if 4 * tc * tkc * 2 + 3 * tc * tc * 4 <= budget:
                t, tk = tc, tkc
                found = True
                break
        if found:
            break
    T = R // t
    ii_np, jj_np = np.triu_indices(T)                 # block pairs with i <= j
    ii = jnp.asarray(ii_np, dtype=jnp.int32)
    jj = jnp.asarray(jj_np, dtype=jnp.int32)
    n_pairs = int(ii_np.shape[0])
    return pl.pallas_call(
        _gram_abt_kernel,
        grid_spec=pltpu.PrefetchScalarGridSpec(
            num_scalar_prefetch=2,
            grid=(n_pairs, K // tk),
            in_specs=[pl.BlockSpec((t, tk), lambda p, k, ii, jj: (ii[p], k)),
                      pl.BlockSpec((t, tk), lambda p, k, ii, jj: (jj[p], k))],
            out_specs=pl.BlockSpec((t, t), lambda p, k, ii, jj: (ii[p], jj[p])),
            scratch_shapes=[pltpu.VMEM((t, t), jnp.float32)]),
        out_shape=jax.ShapeDtypeStruct((R, R), jnp.float32),
        compiler_params=pltpu.CompilerParams(
            dimension_semantics=("arbitrary", "arbitrary"),
            vmem_limit_bytes=vmem_limit),
    )(ii, jj, a, a)


# --------------------------------------------------------------------------- #
# Cosine-similarity stage dispatch.
# --------------------------------------------------------------------------- #
def han_cosines(x, W):
    B, D = x.shape
    Dw, C = W.shape
    assert D == Dw
    vmem_limit = _vmem_limit_bytes()

    # Fused single-kernel fast path when everything comfortably fits VMEM.
    Bp8, Cp8, Dp = _round_up(B, _SUBLANE), _round_up(C, _SUBLANE), _round_up(D, _LANE)
    raw_bytes = 4 * (Bp8 * Dp + Cp8 * Dp + Bp8 * Cp8 + Cp8 * Cp8 + Bp8 * Bp8)
    if 3 * raw_bytes <= int(0.5 * vmem_limit):
        return _fused_cosines(x, W, vmem_limit)

    # Tiled path: bf16 MXU inputs / fp32 accumulation, upper-triangle Grams.
    Bp, Cp, Dpl = _round_up(B, _LANE), _round_up(C, _LANE), _round_up(D, _LANE)
    xp = _pad2d(x.astype(jnp.float32), Bp, Dpl)
    wtp = _pad2d(W.astype(jnp.float32).T, Cp, Dpl)    # single W transpose (W is small)

    xn = _l2_normalize_rows(xp, jnp.bfloat16, vmem_limit)      # [Bp, Dpl]
    wn_t = _l2_normalize_rows(wtp, jnp.bfloat16, vmem_limit)   # [Cp, Dpl]

    costh = _matmul_abt(xn, wn_t, vmem_limit)[:B, :C]          # x_n @ w_n
    costh_w = _gram_upper_abt(wn_t, vmem_limit)[:C, :C]        # w_n^T @ w_n (upper)
    costh_x = _gram_upper_abt(xn, vmem_limit)[:B, :B]          # x_n @ x_n^T (upper)
    return costh, costh_w, costh_x


# --------------------------------------------------------------------------- #
# Plain-JAX glue (tiny, data-dependent: gather / top-k / masking / CE).
# --------------------------------------------------------------------------- #
def _strict_upper_vals(a):
    """Strict-upper-triangle values of a symmetric n x n matrix.
    Same multiset as torch's flatten/view trick (order is irrelevant downstream);
    reads only the upper triangle, so upper-block-only Gram outputs suffice."""
    n = a.shape[0]
    iu, ju = jnp.triu_indices(n, k=1)
    return a[iu, ju]


@functools.partial(jax.jit, static_argnames=("scale",))
def han_softmax_all_forward(x, W, label, scale=15):
    C = W.shape[1]

    costh, costh_w, costh_x = han_cosines(x, W)

    s_w_n = _strict_upper_vals(costh_w)                  # [C*(C-1)//2]
    s_x_n = _strict_upper_vals(costh_x)                  # [B*(B-1)//2]

    # per-row roll so the target-class cosine lands in column 0
    arange = jnp.arange(C, dtype=jnp.int32)[None, :]
    arange2 = (arange + label[:, None].astype(jnp.int32)) % C
    costh2 = jnp.take_along_axis(costh, arange2, axis=1)
    s_p = costh2[:, 0]                                   # [B] positives
    s_n = costh2[:, 1:].reshape(-1)                      # [B*(C-1)] negatives

    s_n_a = jnp.concatenate([s_n, s_w_n, s_x_n])
    k = min(10000, int(s_n_a.shape[0]))
    s_top, _ = lax.top_k(s_n_a, k)

    min_s_p = jnp.min(s_p)
    keep = s_top > min_s_p

    sc = jnp.float32(scale)
    pos_logit = sc * s_p                                 # [B]
    neg_vals = sc * s_top                                # [k], shared by all rows
    masked_neg = jnp.where(keep, neg_vals, -jnp.inf)

    # Cross-entropy vs. target index 0 with a SHARED negative set:
    #   loss_i = -pos_i + logsumexp([pos_i, kept negs])
    # computed without materializing the [B, k] broadcast.
    c = jnp.max(masked_neg)                              # scalar, -inf if nothing kept
    has_neg = jnp.isfinite(c)
    c_safe = jnp.where(has_neg, c, 0.0)
    neg_sum = jnp.sum(jnp.where(keep, jnp.exp(neg_vals - c_safe), 0.0))  # scalar
    m = jnp.maximum(pos_logit, c)                        # per-row max
    sum_exp = jnp.exp(pos_logit - m) + jnp.where(has_neg,
                                                 jnp.exp(c_safe - m) * neg_sum, 0.0)
    loss = jnp.mean(-pos_logit + m + jnp.log(sum_exp))

    # prec1: top-1 accuracy of scale*costh vs. label (scale > 0, argmax unchanged)
    prec1 = 100.0 * jnp.mean((jnp.argmax(costh, axis=1) == label).astype(jnp.float32))

    # prec2: top-1 accuracy of [pos | kept negs] vs. all-zero labels
    max_neg = jnp.max(masked_neg)
    prec2 = 100.0 * jnp.mean((pos_logit >= max_neg).astype(jnp.float32))

    return loss, prec1, prec2


if __name__ == "__main__":
    scale = 15
    key = jax.random.PRNGKey(0)
    kx, kw, kl = jax.random.split(key, 3)

    # Small shapes (fused single-kernel path).
    B, D, C = 8, 32, 16                       # batch, num_out (in_feats), num_class
    x = jax.random.normal(kx, (B, D), dtype=jnp.float32)
    std = (2.0 / (D + C)) ** 0.5              # xavier_normal_(W, gain=1)
    W = std * jax.random.normal(kw, (D, C), dtype=jnp.float32)
    label = jax.random.randint(kl, (B,), 0, C, dtype=jnp.int32)

    loss, prec1, prec2 = han_softmax_all_forward(x, W, label, scale=scale)
    jax.block_until_ready((loss, prec1, prec2))
    assert bool(jnp.isfinite(loss)) and bool(jnp.isfinite(prec1)) and bool(jnp.isfinite(prec2))

    # Larger shapes to exercise the tiled + upper-triangle-Gram path.
    B2, D2, C2 = 2048, 512, 1024
    x2 = jax.random.normal(kx, (B2, D2), dtype=jnp.float32)
    W2 = (2.0 / (D2 + C2)) ** 0.5 * jax.random.normal(kw, (D2, C2), dtype=jnp.float32)
    label2 = jax.random.randint(kl, (B2,), 0, C2, dtype=jnp.int32)
    out2 = han_softmax_all_forward(x2, W2, label2, scale=scale)
    jax.block_until_ready(out2)
    assert all(bool(jnp.isfinite(v)) for v in out2)

    print("KERNEL_OK")
</pallas_src>

<mosaic_0001>
module attributes {stable_mosaic.version = 11 : i64} {
  func.func @_fused_cosine_kernel(%arg0: memref<8x128xf32, #tpu.memory_space<vmem>>, %arg1: memref<16x128xf32, #tpu.memory_space<vmem>>, %arg2: memref<8x16xf32, #tpu.memory_space<vmem>>, %arg3: memref<16x16xf32, #tpu.memory_space<vmem>>, %arg4: memref<8x8xf32, #tpu.memory_space<vmem>>) attributes {dimension_semantics = [], scalar_prefetch = 0 : i64, scratch_operands = 0 : i64, tpu.core_type = #tpu.core_type<tc>} {
    %c0 = arith.constant 0 : index
    %c0_0 = arith.constant 0 : index
    %0 = vector.load %arg0[%c0, %c0_0] : memref<8x128xf32, #tpu.memory_space<vmem>>, vector<8x128xf32>
    %c0_1 = arith.constant 0 : index
    %c0_2 = arith.constant 0 : index
    %1 = vector.load %arg1[%c0_1, %c0_2] : memref<16x128xf32, #tpu.memory_space<vmem>>, vector<16x128xf32>
    %2 = arith.mulf %0, %0 : vector<8x128xf32>
    %cst = arith.constant dense<0.000000e+00> : vector<8xf32>
    %3 = vector.multi_reduction <add>, %2, %cst [1] : vector<8x128xf32> to vector<8xf32>
    %4 = vector.shape_cast %3 : vector<8xf32> to vector<8x1xf32>
    %cst_3 = arith.constant 1.000000e-24 : f32
    %5 = vector.broadcast %cst_3 : f32 to vector<8x1xf32>
    %6 = arith.maximumf %4, %5 : vector<8x1xf32>
    %7 = math.rsqrt %6 : vector<8x1xf32>
    %8 = vector.broadcast %7 : vector<8x1xf32> to vector<8x128xf32>
    %9 = arith.mulf %0, %8 : vector<8x128xf32>
    %10 = arith.mulf %1, %1 : vector<16x128xf32>
    %cst_4 = arith.constant dense<0.000000e+00> : vector<16xf32>
    %11 = vector.multi_reduction <add>, %10, %cst_4 [1] : vector<16x128xf32> to vector<16xf32>
    %12 = vector.shape_cast %11 : vector<16xf32> to vector<16x1xf32>
    %cst_5 = arith.constant 1.000000e-24 : f32
    %13 = vector.broadcast %cst_5 : f32 to vector<16x1xf32>
    %14 = arith.maximumf %12, %13 : vector<16x1xf32>
    %15 = math.rsqrt %14 : vector<16x1xf32>
    %16 = vector.broadcast %15 : vector<16x1xf32> to vector<16x128xf32>
    %17 = arith.mulf %1, %16 : vector<16x128xf32>
    %cst_6 = arith.constant dense<0.000000e+00> : vector<8x16xf32>
    %18 = tpu.matmul %9, %17, %cst_6 {dimension_numbers = #tpu.dot_dimension_numbers<[1], [1], [0], [0], [0, 0, 1, 0], [], []>} : vector<8x128xf32>, vector<16x128xf32>, vector<8x16xf32> -> vector<8x16xf32>
    %c0_7 = arith.constant 0 : index
    %c0_8 = arith.constant 0 : index
    %19 = vector.load %arg2[%c0_7, %c0_8] : memref<8x16xf32, #tpu.memory_space<vmem>>, vector<8x16xf32>
    tpu.vector_store %arg2[%c0_7, %c0_8], %18 {strides = array<i32>} : memref<8x16xf32, #tpu.memory_space<vmem>>, vector<8x16xf32>,
    %cst_9 = arith.constant dense<0.000000e+00> : vector<16x16xf32>
    %20 = tpu.matmul %17, %17, %cst_9 {dimension_numbers = #tpu.dot_dimension_numbers<[1], [1], [0], [0], [0, 0, 1, 0], [], []>} : vector<16x128xf32>, vector<16x128xf32>, vector<16x16xf32> -> vector<16x16xf32>
    %c0_10 = arith.constant 0 : index
    %c0_11 = arith.constant 0 : index
    %21 = vector.load %arg3[%c0_10, %c0_11] : memref<16x16xf32, #tpu.memory_space<vmem>>, vector<16x16xf32>
    tpu.vector_store %arg3[%c0_10, %c0_11], %20 {strides = array<i32>} : memref<16x16xf32, #tpu.memory_space<vmem>>, vector<16x16xf32>,
    %cst_12 = arith.constant dense<0.000000e+00> : vector<8x8xf32>
    %22 = tpu.matmul %9, %9, %cst_12 {dimension_numbers = #tpu.dot_dimension_numbers<[1], [1], [0], [0], [0, 0, 1, 0], [], []>} : vector<8x128xf32>, vector<8x128xf32>, vector<8x8xf32> -> vector<8x8xf32>
    %c0_13 = arith.constant 0 : index
    %c0_14 = arith.constant 0 : index
    %23 = vector.load %arg4[%c0_13, %c0_14] : memref<8x8xf32, #tpu.memory_space<vmem>>, vector<8x8xf32>
    tpu.vector_store %arg4[%c0_13, %c0_14], %22 {strides = array<i32>} : memref<8x8xf32, #tpu.memory_space<vmem>>, vector<8x8xf32>,
    return
  }
}

</mosaic_0001>

<llo_original>
// kernel: han_softmax_all_forward.1
$region0: #{han_softmax_all_forward.1}
  #allocation0 [shape = 'u32[]', space=smem, size = 0x4, offset = 0x4, fixed_abs, tag = 'smem constant byte address 0x4 - core index']
  #allocation1 [shape = 'u32[72,128]{1,0:T(1,128)}', space=vmem, size = 0x9000, scoped, tag = 'internal scratch']
  %s0 = inlined_call_operand.vmem [shape: f32[8,128], index: 0, kind: input, shape index: {}]
  %s1 = inlined_call_operand.vmem [shape: f32[16,128], index: 1, kind: input, shape index: {}]
  %s2 = inlined_call_operand.vmem [shape: f32[8,16], index: 2, kind: output, shape index: {0}]
  %s3 = inlined_call_operand.vmem [shape: f32[16,16], index: 3, kind: output, shape index: {1}]
  %s4 = inlined_call_operand.vmem [shape: f32[8,8], index: 4, kind: output, shape index: {2}]
  %5 = xla_tuple %s2, %s3, %s4
  %s6 = sld [smem:[#allocation0]]
  $region34: #{han_softmax_all_forward.1} parent=0
    _
  %s8 = ssub.s32 1, %s6
  %s9 = scalar_select 0, %s8, %s6
  // Predicated region
  $region2: #{han_softmax_all_forward.1} parent=0 // pred_check
    _
  $region3: #{han_softmax_all_forward.1} parent=0 // pred_check_branch
    %11 = sbr.rel (0) target = $region5
  $region4: #{han_softmax_all_forward.1} parent=0 // pred_region
    _
  $region5: #{han_softmax_all_forward.1} parent=0 // pred_fallthru
    _
  // Predicated region
  $region6: #{han_softmax_all_forward.1} parent=0 // pred_check
    _
  $region7: #{han_softmax_all_forward.1} parent=0 // pred_check_branch
    %13 = sbr.rel (0) target = $region9
  $region8: #{han_softmax_all_forward.1} parent=0 // pred_region
    _
  $region9: #{han_softmax_all_forward.1} parent=0 // pred_fallthru
    _
  %v14 = vld [vmem:[%s0] sm:$0xff]
  %v15 = vld [vmem:[%s1] sm:$0xff]
  %v16 = vld [vmem:[%s1 + $0x8] sm:$0xff]
  %v17 = vmul.f32 %v14, %v14
  %18 = vadd.xlane.f32.xlu0 %v17
  %v19 = vpop.xlane.xlu0 %18
  %v20 = vmax.f32 %v19, 1e-24
  %v21 = vrsqrt.pop %v20
  %v22 = vmul.f32 %v21, %v20
  %v23 = vmul.f32 %v22, %v21
  %v24 = vmul.f32 0.5, %v23
  %v25 = vsub.f32 1.5, %v24
  %v26 = vmul.f32 %v21, %v25
  %vm27 = vweird.f32 %v20
  %vm28 = vweird.f32 %v21
  %vm29 = vmor %vm27, %vm28
  %v30 = vsel %vm29, %v21, %v26
  %v31 = vmul.f32 %v14, %v30
  %v32 = vmul.f32 %v15, %v15
  %v33 = vmul.f32 %v16, %v16
  %34 = vadd.xlane.f32.xlu0 %v32
  %v35 = vpop.xlane.xlu0 %34
  %36 = vadd.xlane.f32.xlu0 %v33
  %v37 = vpop.xlane.xlu0 %36
  %v38 = vmax.f32 %v35, 1e-24
  %v39 = vmax.f32 %v37, 1e-24
  %v40 = vrsqrt.pop %v38
  %v41 = vmul.f32 %v40, %v38
  %v42 = vmul.f32 %v41, %v40
  %v43 = vmul.f32 0.5, %v42
  %v44 = vsub.f32 1.5, %v43
  %v45 = vmul.f32 %v40, %v44
  %vm46 = vweird.f32 %v38
  %vm47 = vweird.f32 %v40
  %vm48 = vmor %vm46, %vm47
  %v49 = vsel %vm48, %v40, %v45
  %v50 = vrsqrt.pop %v39
  %v51 = vmul.f32 %v50, %v39
  %v52 = vmul.f32 %v51, %v50
  %v53 = vmul.f32 0.5, %v52
  %v54 = vsub.f32 1.5, %v53
  %v55 = vmul.f32 %v50, %v54
  %vm56 = vweird.f32 %v39
  %vm57 = vweird.f32 %v50
  %vm58 = vmor %vm56, %vm57
  %v59 = vsel %vm58, %v50, %v55
  %v60 = vmul.f32 %v15, %v49
  %v61 = vmul.f32 %v16, %v59
  %62 = vmatpush.xpose.msra.mxu0 0.0
  %63 = vmatpush.xpose.msra.mxu0 0.0
  %64 = vmatpush.xpose.msra.mxu0 0.0
  %65 = vmatpush.xpose.msra.mxu0 0.0
  %66 = vmatpush.xpose.msra.mxu0 0.0
  %67 = vmatpush.xpose.msra.mxu0 0.0
  %68 = vmatpush.xpose.msra.mxu0 0.0
  %69 = vmatpush.xpose.msra.mxu0 0.0
  %70 = vmatpush.xpose.msra.mxu0 0.0
  %71 = vmatpush.xpose.msra.mxu0 0.0
  %72 = vmatpush.xpose.msra.mxu0 0.0
  %73 = vmatpush.xpose.msra.mxu0 0.0
  %74 = vmatpush.xpose.msra.mxu0 0.0
  %75 = vmatpush.xpose.msra.mxu0 0.0
  %76 = vmatpush.xpose.msra.mxu0 %v61
  %77 = vmatpush.xpose.msra.mxu0 %v60
  %78 = vmatmul.f32.gmra.mxu0 %v31
  %v79 = vpop.f32.mrf.mxu0
  %v80 = vadd.f32 0.0, %v79
  %81 = vdwg.mxu0
  %vm82 = vcmask 130048
  %83 = vst.msk [vmem:[%s2] sm:$0xff] %vm82, %v80
  %84 = vmatpush.xpose.msra.mxu0 0.0
  %85 = vmatpush.xpose.msra.mxu0 0.0
  %86 = vmatpush.xpose.msra.mxu0 0.0
  %87 = vmatpush.xpose.msra.mxu0 0.0
  %88 = vmatpush.xpose.msra.mxu0 0.0
  %89 = vmatpush.xpose.msra.mxu0 0.0
  %90 = vmatpush.xpose.msra.mxu0 0.0
  %91 = vmatpush.xpose.msra.mxu0 0.0
  %92 = vmatpush.xpose.msra.mxu0 0.0
  %93 = vmatpush.xpose.msra.mxu0 0.0
  %94 = vmatpush.xpose.msra.mxu0 0.0
  %95 = vmatpush.xpose.msra.mxu0 0.0
  %96 = vmatpush.xpose.msra.mxu0 0.0
  %97 = vmatpush.xpose.msra.mxu0 0.0
  %98 = vmatpush.xpose.msra.mxu0 %v61
  %99 = vmatpush.xpose.msra.mxu0 %v60
  %100 = vmatmul.f32.gmra.mxu0 %v60
  %v101 = vpop.f32.mrf.mxu0
  %v102 = vadd.f32 0.0, %v101
  %103 = vmatmul.f32.gmra.mxu0 %v61
  %v104 = vpop.f32.mrf.mxu0
  %v105 = vadd.f32 0.0, %v104
  %106 = vdwg.mxu0
  %107 = vst.msk [vmem:[%s3] sm:$0xff] %vm82, %v102
  %108 = vst.msk [vmem:[%s3 + $0x8] sm:$0xff] %vm82, %v105
  %109 = vmatpush.xpose.msra.mxu0 0.0
  %110 = vmatpush.xpose.msra.mxu0 0.0
  %111 = vmatpush.xpose.msra.mxu0 0.0
  %112 = vmatpush.xpose.msra.mxu0 0.0
  %113 = vmatpush.xpose.msra.mxu0 0.0
  %114 = vmatpush.xpose.msra.mxu0 0.0
  %115 = vmatpush.xpose.msra.mxu0 0.0
  %116 = vmatpush.xpose.msra.mxu0 0.0
  %117 = vmatpush.xpose.msra.mxu0 0.0
  %118 = vmatpush.xpose.msra.mxu0 0.0
  %119 = vmatpush.xpose.msra.mxu0 0.0
  %120 = vmatpush.xpose.msra.mxu0 0.0
  %121 = vmatpush.xpose.msra.mxu0 0.0
  %122 = vmatpush.xpose.msra.mxu0 0.0
  %123 = vmatpush.xpose.msra.mxu0 0.0
  %124 = vmatpush.xpose.msra.mxu0 %v31
  %125 = vmatmul.f32.gmra.mxu0 %v31
  %v126 = vpop.f32.mrf.mxu0
  %v127 = vadd.f32 0.0, %v126
  %128 = vdwg.mxu0
  %vm129 = vcmask 64512
  %130 = vst.msk [vmem:[%s4] sm:$0xff] %vm129, %v127
  // Predicated region
  $region10: #{han_softmax_all_forward.1} parent=0 // pred_check
    _
  $region11: #{han_softmax_all_forward.1} parent=0 // pred_check_branch
    %132 = sbr.rel (0) target = $region13
  $region12: #{han_softmax_all_forward.1} parent=0 // pred_region
    _
  $region13: #{han_softmax_all_forward.1} parent=0 // pred_fallthru
    _
  // Predicated region
  $region14: #{han_softmax_all_forward.1} parent=0 // pred_check
    _
  $region15: #{han_softmax_all_forward.1} parent=0 // pred_check_branch
    %134 = sbr.rel (0) target = $region17
  $region16: #{han_softmax_all_forward.1} parent=0 // pred_region
    _
  $region17: #{han_softmax_all_forward.1} parent=0 // pred_fallthru
    _
  // Predicated region
  $region18: #{han_softmax_all_forward.1} parent=0 // pred_check
    _
  $region19: #{han_softmax_all_forward.1} parent=0 // pred_check_branch
    %136 = sbr.rel (0) target = $region21
  $region20: #{han_softmax_all_forward.1} parent=0 // pred_region
    _
  $region21: #{han_softmax_all_forward.1} parent=0 // pred_fallthru
    _
  // Predicated region
  $region22: #{han_softmax_all_forward.1} parent=0 // pred_check
    _
  $region23: #{han_softmax_all_forward.1} parent=0 // pred_check_branch
    %138 = sbr.rel (0) target = $region25
  $region24: #{han_softmax_all_forward.1} parent=0 // pred_region
    _
  $region25: #{han_softmax_all_forward.1} parent=0 // pred_fallthru
    _
  // Predicated region
  $region26: #{han_softmax_all_forward.1} parent=0 // pred_check
    _
  $region27: #{han_softmax_all_forward.1} parent=0 // pred_check_branch
    %140 = sbr.rel (0) target = $region29
  $region28: #{han_softmax_all_forward.1} parent=0 // pred_region
    _
  $region29: #{han_softmax_all_forward.1} parent=0 // pred_fallthru
    _
  // Predicated region
  $region30: #{han_softmax_all_forward.1} parent=0 // pred_check
    _
  $region31: #{han_softmax_all_forward.1} parent=0 // pred_check_branch
    %142 = sbr.rel (0) target = $region33
  $region32: #{han_softmax_all_forward.1} parent=0 // pred_region
    _
  $region33: #{han_softmax_all_forward.1} parent=0 // pred_fallthru
    _

</llo_original>
